<compile_context>
chip_gen: v5e
topology: v5e:2x2
jax: 0.10.0
libtpu: 0.0.40
codegen_flags: <defaults>
</compile_context>

<pallas_src>
import jax
import jax.numpy as jnp
from jax.experimental import pallas as pl
from jax.experimental.pallas import tpu as pltpu

EPS = 1e-5
LANE = 128


def _round_up(x, m):
    return (x + m - 1) // m * m


def _pick_batch_block(b):
    """Largest divisor of b that still leaves >=2 batch blocks (v7x megacore)."""
    if b < 2:
        return max(b, 1)
    for bt in range(b // 2, 0, -1):
        if b % bt == 0:
            return bt
    return 1


def mlp_fused_kernel(x_ref, wt_ref, b_ref, alpha_ref, beta_ref, o_ref, acc_ref):
    # Shapes seen inside the kernel (leading layer dim squeezed away):
    #   x_ref / o_ref / acc_ref : (Bt, D, Np)
    #   wt_ref                  : (Np, Np)   pre-transposed: (n_in, n_out)
    #   b_ref                   : (1, Np)
    #   alpha_ref / beta_ref    : (D, 1)
    bt, d, npad = acc_ref.shape
    layer = pl.program_id(1)

    @pl.when(layer == 0)
    def _():
        # Load the activation once per batch block; it then stays resident in
        # VMEM (f32) across all layers.
        acc_ref[...] = x_ref[...].astype(jnp.float32)

    x = acc_ref[...]                                    # (Bt, D, Np) f32
    w = wt_ref[...]                                     # native dtype -> MXU

    # FCTemporal: y = x @ W^T + b  (W already transposed wrapper-side, so no
    # in-kernel transpose). Leading-dim merge (Bt, D) -> Bt*D is layout-free.
    x2 = x.reshape(bt * d, npad)
    y = jnp.dot(x2.astype(w.dtype), w, preferred_element_type=jnp.float32)
    y = y + b_ref[...].astype(jnp.float32)              # (Bt*D, Np) + (1, Np)
    y = y.reshape(bt, d, npad)

    # LayerNormSpatial: normalize over the channel (D) axis, per (batch, seq).
    mean = jnp.mean(y, axis=1, keepdims=True)           # (Bt, 1, Np)
    yc = y - mean
    var = jnp.mean(yc * yc, axis=1, keepdims=True)
    inv_std = jax.lax.rsqrt(var + EPS)                  # EUP rsqrt
    y_norm = (yc * inv_std) * alpha_ref[...].astype(jnp.float32) \
        + beta_ref[...].astype(jnp.float32)             # (D,1) broadcasts over Np

    out = x + y_norm                                    # residual, f32
    acc_ref[...] = out

    @pl.when(layer == pl.num_programs(1) - 1)
    def _():
        o_ref[...] = out.astype(o_ref.dtype)


def mlp_forward(x, params):
    """x: (B, D, N); params: list of (w (N,N), b (1,N), alpha (D,1), beta (D,1))."""
    B, D, N = x.shape
    L = len(params)
    n_pad = _round_up(N, LANE)
    pad_n = n_pad - N
    bt = _pick_batch_block(B)
    # TODO(synk): for production-sized N/D that no longer fit whole-array VMEM
    # blocks (re-derive against v7x's 64 MiB VMEM), tile the matmul with a
    # (tm,tn,tk) grid + f32 scratch accumulator and a two-pass/Welford LayerNorm
    # across D tiles; the demo shapes fit whole-array blocks comfortably.

    x_p = jnp.pad(x, ((0, 0), (0, 0), (0, pad_n)))

    # Stack + pre-transpose + lane-pad the per-layer params once (outside the
    # kernel; no per-grid-step transpose).
    wt = jnp.stack([jnp.pad(w.T, ((0, pad_n), (0, pad_n))) for (w, _, _, _) in params])
    bias = jnp.stack([jnp.pad(b, ((0, 0), (0, pad_n))) for (_, b, _, _) in params])
    alpha = jnp.stack([a for (_, _, a, _) in params])
    beta = jnp.stack([bb for (_, _, _, bb) in params])

    x_bytes = x_p.size * jnp.dtype(x.dtype).itemsize
    p_bytes = sum(a.size * jnp.dtype(a.dtype).itemsize for a in (wt, bias, alpha, beta))
    cost = pl.CostEstimate(
        flops=int(2 * B * D * n_pad * n_pad * L + 8 * B * D * n_pad * L),
        transcendentals=int(B * n_pad * L),
        bytes_accessed=int(2 * x_bytes + p_bytes),
    )

    out = pl.pallas_call(
        mlp_fused_kernel,
        out_shape=jax.ShapeDtypeStruct((B, D, n_pad), x.dtype),
        grid_spec=pltpu.PrefetchScalarGridSpec(
            num_scalar_prefetch=0,
            grid=(B // bt, L),
            in_specs=[
                pl.BlockSpec((bt, D, n_pad), lambda b, l: (b, 0, 0)),
                pl.BlockSpec((pl.Squeezed(), n_pad, n_pad), lambda b, l: (l, 0, 0)),
                pl.BlockSpec((pl.Squeezed(), 1, n_pad), lambda b, l: (l, 0, 0)),
                pl.BlockSpec((pl.Squeezed(), D, 1), lambda b, l: (l, 0, 0)),
                pl.BlockSpec((pl.Squeezed(), D, 1), lambda b, l: (l, 0, 0)),
            ],
            out_specs=pl.BlockSpec((bt, D, n_pad), lambda b, l: (b, 0, 0)),
            scratch_shapes=[pltpu.VMEM((bt, D, n_pad), jnp.float32)],
        ),
        compiler_params=pltpu.CompilerParams(
            dimension_semantics=("parallel", "arbitrary"),
        ),
        input_output_aliases={0: 0},
        cost_estimate=cost,
    )(x_p, wt, bias, alpha, beta)

    return out[:, :, :N] if pad_n else out


def init_params(key, dim, seq, num_layers, dtype=jnp.float32, gain=1e-8):
    """Matches MLPBlock.reset_parameters: xavier_uniform_(gain) weight, zero bias,
    LayerNormSpatial alpha=1, beta=0."""
    params = []
    limit = gain * (6.0 / (seq + seq)) ** 0.5
    for _ in range(num_layers):
        key, wkey = jax.random.split(key)
        w = jax.random.uniform(wkey, (seq, seq), dtype=dtype,
                               minval=-limit, maxval=limit)
        b = jnp.zeros((1, seq), dtype=dtype)
        alpha = jnp.ones((dim, 1), dtype=dtype)
        beta = jnp.zeros((dim, 1), dtype=dtype)
        params.append((w, b, alpha, beta))
    return params


def init_params_random(key, dim, seq, num_layers, dtype=jnp.float32):
    """O(1) random params — actually exercises the matmul / LN / affine paths."""
    params = []
    for _ in range(num_layers):
        key, wk, bk, ak, gk = jax.random.split(key, 5)
        w = 0.5 * jax.random.normal(wk, (seq, seq), dtype=dtype)
        b = 0.1 * jax.random.normal(bk, (1, seq), dtype=dtype)
        alpha = 1.0 + 0.1 * jax.random.normal(ak, (dim, 1), dtype=dtype)
        beta = 0.1 * jax.random.normal(gk, (dim, 1), dtype=dtype)
        params.append((w, b, alpha, beta))
    return params


def mlp_forward_ref(x, params):
    """Pure-JAX reference of the same forward for correctness checks."""
    for w, b, alpha, beta in params:
        y = jnp.einsum("bdn,mn->bdm", x, w) + b.reshape(1, 1, -1)
        mean = jnp.mean(y, axis=1, keepdims=True)
        var = jnp.mean((y - mean) ** 2, axis=1, keepdims=True)
        y = (y - mean) / jnp.sqrt(var + EPS)
        y = y * alpha[None] + beta[None]
        x = x + y
    return x


if __name__ == "__main__":
    # Small shapes consistent with the module: x is (batch, dim, seq).
    B, DIM, SEQ, NUM_LAYERS = 2, 32, 8, 3

    key = jax.random.PRNGKey(0)
    key, xkey = jax.random.split(key)
    x = jax.random.normal(xkey, (B, DIM, SEQ), dtype=jnp.float32)

    # 1) Spec-faithful init (xavier gain=1e-8 -> blocks are near-identity).
    params = init_params(key, DIM, SEQ, NUM_LAYERS)
    out = jax.block_until_ready(mlp_forward(x, params))
    ref = jax.block_until_ready(mlp_forward_ref(x, params))
    assert out.shape == (B, DIM, SEQ)
    assert jnp.allclose(out, ref, atol=1e-5, rtol=1e-5), "mismatch (spec init)"

    # 2) O(1) random params: exercises the matmul + LayerNorm + affine path
    #    (review noted the 1e-8-gain init barely tests it).
    params_big = init_params_random(jax.random.PRNGKey(1), DIM, SEQ, NUM_LAYERS)
    out2 = jax.block_until_ready(mlp_forward(x, params_big))
    ref2 = jax.block_until_ready(mlp_forward_ref(x, params_big))
    assert jnp.allclose(out2, ref2, atol=1e-4, rtol=1e-4), "mismatch (O(1) init)"

    print("KERNEL_OK")
</pallas_src>

<mosaic_0001>
module attributes {stable_mosaic.version = 11 : i64} {
  func.func @mlp_fused_kernel(%arg0: i32, %arg1: i32, %arg2: memref<1x32x128xf32, #tpu.memory_space<vmem>>, %arg3: memref<1x128x128xf32, #tpu.memory_space<vmem>>, %arg4: memref<1x1x128xf32, #tpu.memory_space<vmem>>, %arg5: memref<1x32x1xf32, #tpu.memory_space<vmem>>, %arg6: memref<1x32x1xf32, #tpu.memory_space<vmem>>, %arg7: memref<1x32x128xf32, #tpu.memory_space<vmem>>, %arg8: memref<1x32x128xf32, #tpu.memory_space<vmem>>) attributes {dimension_semantics = [#tpu.dimension_semantics<parallel>, #tpu.dimension_semantics<arbitrary>], iteration_bounds = array<i64: 2, 3>, scalar_prefetch = 0 : i64, scratch_operands = 1 : i64, tpu.core_type = #tpu.core_type<tc>, window_params = [{transform_indices = @transform_0, window_bounds = array<i64: 1, 32, 128>}, {transform_indices = @transform_1, window_bounds = array<i64: 1, 128, 128>}, {transform_indices = @transform_2, window_bounds = array<i64: 1, 1, 128>}, {transform_indices = @transform_3, window_bounds = array<i64: 1, 32, 1>}, {transform_indices = @transform_4, window_bounds = array<i64: 1, 32, 1>}, {transform_indices = @transform_5, window_bounds = array<i64: 1, 32, 128>}]} {
    %c0_i32 = arith.constant 0 : i32
    %0 = arith.cmpi eq, %arg1, %c0_i32 : i32
    %1 = arith.extui %0 : i1 to i32
    %c0_i32_0 = arith.constant 0 : i32
    %2 = arith.cmpi ne, %1, %c0_i32_0 : i32
    scf.if %2 {
      %c0_24 = arith.constant 0 : index
      %c0_25 = arith.constant 0 : index
      %c0_26 = arith.constant 0 : index
      %44 = vector.load %arg2[%c0_24, %c0_25, %c0_26] : memref<1x32x128xf32, #tpu.memory_space<vmem>>, vector<1x32x128xf32>
      %c0_27 = arith.constant 0 : index
      %c0_28 = arith.constant 0 : index
      %c0_29 = arith.constant 0 : index
      %45 = vector.load %arg8[%c0_27, %c0_28, %c0_29] : memref<1x32x128xf32, #tpu.memory_space<vmem>>, vector<1x32x128xf32>
      tpu.vector_store %arg8[%c0_27, %c0_28, %c0_29], %44 {strides = array<i32>} : memref<1x32x128xf32, #tpu.memory_space<vmem>>, vector<1x32x128xf32>,
    } else {
    }
    %c0 = arith.constant 0 : index
    %c0_1 = arith.constant 0 : index
    %c0_2 = arith.constant 0 : index
    %3 = vector.load %arg8[%c0, %c0_1, %c0_2] : memref<1x32x128xf32, #tpu.memory_space<vmem>>, vector<1x32x128xf32>
    %c0_3 = arith.constant 0 : index
    %c0_4 = arith.constant 0 : index
    %c0_5 = arith.constant 0 : index
    %4 = vector.load %arg3[%c0_3, %c0_4, %c0_5] : memref<1x128x128xf32, #tpu.memory_space<vmem>>, vector<1x128x128xf32>
    %5 = vector.shape_cast %4 : vector<1x128x128xf32> to vector<128x128xf32>
    %6 = vector.shape_cast %3 : vector<1x32x128xf32> to vector<32x128xf32>
    %cst = arith.constant dense<0.000000e+00> : vector<32x128xf32>
    %7 = tpu.matmul %6, %5, %cst {dimension_numbers = #tpu.dot_dimension_numbers<[1], [0], [0], [1], [0, 0, 1, 1], [], []>} : vector<32x128xf32>, vector<128x128xf32>, vector<32x128xf32> -> vector<32x128xf32>
    %c0_6 = arith.constant 0 : index
    %c0_7 = arith.constant 0 : index
    %c0_8 = arith.constant 0 : index
    %8 = vector.load %arg4[%c0_6, %c0_7, %c0_8] : memref<1x1x128xf32, #tpu.memory_space<vmem>>, vector<1x1x128xf32>
    %9 = vector.shape_cast %8 : vector<1x1x128xf32> to vector<1x128xf32>
    %10 = vector.broadcast %9 : vector<1x128xf32> to vector<32x128xf32>
    %11 = arith.addf %7, %10 : vector<32x128xf32>
    %12 = vector.shape_cast %11 : vector<32x128xf32> to vector<1x32x128xf32>
    %cst_9 = arith.constant dense<0.000000e+00> : vector<1x128xf32>
    %13 = vector.multi_reduction <add>, %12, %cst_9 [1] : vector<1x32x128xf32> to vector<1x128xf32>
    %14 = vector.shape_cast %13 : vector<1x128xf32> to vector<1x1x128xf32>
    %cst_10 = arith.constant 3.200000e+01 : f32
    %15 = vector.broadcast %cst_10 : f32 to vector<1x1x128xf32>
    %16 = arith.divf %14, %15 : vector<1x1x128xf32>
    %17 = vector.broadcast %16 : vector<1x1x128xf32> to vector<1x32x128xf32>
    %18 = arith.subf %12, %17 : vector<1x32x128xf32>
    %19 = arith.mulf %18, %18 : vector<1x32x128xf32>
    %cst_11 = arith.constant dense<0.000000e+00> : vector<1x128xf32>
    %20 = vector.multi_reduction <add>, %19, %cst_11 [1] : vector<1x32x128xf32> to vector<1x128xf32>
    %21 = vector.shape_cast %20 : vector<1x128xf32> to vector<1x1x128xf32>
    %cst_12 = arith.constant 3.200000e+01 : f32
    %22 = vector.broadcast %cst_12 : f32 to vector<1x1x128xf32>
    %23 = arith.divf %21, %22 : vector<1x1x128xf32>
    %cst_13 = arith.constant 9.99999974E-6 : f32
    %24 = vector.broadcast %cst_13 : f32 to vector<1x1x128xf32>
    %25 = arith.addf %23, %24 : vector<1x1x128xf32>
    %26 = math.rsqrt %25 : vector<1x1x128xf32>
    %27 = vector.broadcast %26 : vector<1x1x128xf32> to vector<1x32x128xf32>
    %28 = arith.mulf %18, %27 : vector<1x32x128xf32>
    %c0_14 = arith.constant 0 : index
    %c0_15 = arith.constant 0 : index
    %c0_16 = arith.constant 0 : index
    %29 = vector.load %arg5[%c0_14, %c0_15, %c0_16] : memref<1x32x1xf32, #tpu.memory_space<vmem>>, vector<1x32x1xf32>
    %30 = vector.shape_cast %29 : vector<1x32x1xf32> to vector<32x1xf32>
    %31 = vector.shape_cast %30 : vector<32x1xf32> to vector<1x32x1xf32>
    %32 = vector.broadcast %31 : vector<1x32x1xf32> to vector<1x32x128xf32>
    %33 = arith.mulf %28, %32 : vector<1x32x128xf32>
    %c0_17 = arith.constant 0 : index
    %c0_18 = arith.constant 0 : index
    %c0_19 = arith.constant 0 : index
    %34 = vector.load %arg6[%c0_17, %c0_18, %c0_19] : memref<1x32x1xf32, #tpu.memory_space<vmem>>, vector<1x32x1xf32>
    %35 = vector.shape_cast %34 : vector<1x32x1xf32> to vector<32x1xf32>
    %36 = vector.shape_cast %35 : vector<32x1xf32> to vector<1x32x1xf32>
    %37 = vector.broadcast %36 : vector<1x32x1xf32> to vector<1x32x128xf32>
    %38 = arith.addf %33, %37 : vector<1x32x128xf32>
    %39 = arith.addf %3, %38 : vector<1x32x128xf32>
    %c0_20 = arith.constant 0 : index
    %c0_21 = arith.constant 0 : index
    %c0_22 = arith.constant 0 : index
    %40 = vector.load %arg8[%c0_20, %c0_21, %c0_22] : memref<1x32x128xf32, #tpu.memory_space<vmem>>, vector<1x32x128xf32>
    tpu.vector_store %arg8[%c0_20, %c0_21, %c0_22], %39 {strides = array<i32>} : memref<1x32x128xf32, #tpu.memory_space<vmem>>, vector<1x32x128xf32>,
    %c2_i32 = arith.constant 2 : i32
    %41 = arith.cmpi eq, %arg1, %c2_i32 : i32
    %42 = arith.extui %41 : i1 to i32
    %c0_i32_23 = arith.constant 0 : i32
    %43 = arith.cmpi ne, %42, %c0_i32_23 : i32
    scf.if %43 {
      %c0_24 = arith.constant 0 : index
      %c0_25 = arith.constant 0 : index
      %c0_26 = arith.constant 0 : index
      %44 = vector.load %arg7[%c0_24, %c0_25, %c0_26] : memref<1x32x128xf32, #tpu.memory_space<vmem>>, vector<1x32x128xf32>
      tpu.vector_store %arg7[%c0_24, %c0_25, %c0_26], %39 {strides = array<i32>} : memref<1x32x128xf32, #tpu.memory_space<vmem>>, vector<1x32x128xf32>,
    } else {
    }
    return
  }
  func.func @transform_0(%arg0: i32, %arg1: i32) -> (i32, i32, i32) {
    %c0_i32 = arith.constant 0 : i32
    %c0_i32_0 = arith.constant 0 : i32
    %c0_i32_1 = arith.constant 0 : i32
    return %arg0, %c0_i32, %c0_i32_0 : i32, i32, i32
  }
  func.func @transform_1(%arg0: i32, %arg1: i32) -> (i32, i32, i32) {
    %c0_i32 = arith.constant 0 : i32
    %c0_i32_0 = arith.constant 0 : i32
    %c0_i32_1 = arith.constant 0 : i32
    return %arg1, %c0_i32, %c0_i32_0 : i32, i32, i32
  }
  func.func @transform_2(%arg0: i32, %arg1: i32) -> (i32, i32, i32) {
    %c0_i32 = arith.constant 0 : i32
    %c0_i32_0 = arith.constant 0 : i32
    %c0_i32_1 = arith.constant 0 : i32
    return %arg1, %c0_i32, %c0_i32_0 : i32, i32, i32
  }
  func.func @transform_3(%arg0: i32, %arg1: i32) -> (i32, i32, i32) {
    %c0_i32 = arith.constant 0 : i32
    %c0_i32_0 = arith.constant 0 : i32
    %c0_i32_1 = arith.constant 0 : i32
    return %arg1, %c0_i32, %c0_i32_0 : i32, i32, i32
  }
  func.func @transform_4(%arg0: i32, %arg1: i32) -> (i32, i32, i32) {
    %c0_i32 = arith.constant 0 : i32
    %c0_i32_0 = arith.constant 0 : i32
    %c0_i32_1 = arith.constant 0 : i32
    return %arg1, %c0_i32, %c0_i32_0 : i32, i32, i32
  }
  func.func @transform_5(%arg0: i32, %arg1: i32) -> (i32, i32, i32) {
    %c0_i32 = arith.constant 0 : i32
    %c0_i32_0 = arith.constant 0 : i32
    %c0_i32_1 = arith.constant 0 : i32
    return %arg0, %c0_i32, %c0_i32_0 : i32, i32, i32
  }
}

</mosaic_0001>

<llo_original>
// kernel: tpu_custom_call.1
$region0: #{tpu_custom_call.1}
  #allocation0 [shape = 'u32[]', space=smem, size = 0x4, offset = 0x4, fixed_abs, tag = 'smem constant byte address 0x4 - core index']
  #allocation1 [shape = 'u32[72,128]{1,0:T(1,128)}', space=vmem, size = 0x9000, scoped, tag = 'internal scratch']
  #allocation2 [shape = 'f32[1,32,128]{2,1,0:T(8,128)}', space=vmem, size = 0x4000, scoped, tag = 'scratch operand']
  %s0 = inlined_call_operand.hbm [shape: f32[2,32,128], index: 0, kind: input, shape index: {}, may-alias: {0,5}]
  %s1 = inlined_call_operand.hbm [shape: f32[3,128,128], index: 1, kind: input, shape index: {}]
  %s2 = inlined_call_operand.vmem [shape: f32[3,1,128], index: 2, kind: input, shape index: {}]
  %s3 = inlined_call_operand.vmem [shape: f32[3,32,1], index: 3, kind: input, shape index: {}]
  %s4 = inlined_call_operand.vmem [shape: f32[3,32,1], index: 4, kind: input, shape index: {}]
  %s5 = inlined_call_operand.hbm [shape: f32[2,32,128], index: 5, kind: output, shape index: {}, may-alias: {0,5}]
  %s6 = sld [smem:[#allocation0]]
  $region69: #{tpu_custom_call.1} parent=0
    _
  %s8 = ssub.s32 1, %s6
  %s9 = scalar_select 0, %s8, %s6
  $region1: #{tpu_custom_call.1} parent=0
    #allocation3 [shape = 'u8[32768]{0}', space=vmem, size = 0x8000, scoped, tag = 'input window, operand 0']
    #allocation4 [shape = 's32[2]{0}', space=sflag, size = 0x8, scoped, tag = 'scoped memory for tpu_custom_call.1']
    #allocation5 [shape = 's32[2]{0}', space=sflag, size = 0x8, scoped, tag = 'scoped memory for tpu_custom_call.1']
    #allocation6 [shape = 'u8[131072]{0}', space=vmem, size = 0x20000, scoped, tag = 'input window, operand 1']
    #allocation7 [shape = 's32[2]{0}', space=sflag, size = 0x8, scoped, tag = 'scoped memory for tpu_custom_call.1']
    #allocation8 [shape = 'u8[32768]{0}', space=vmem, size = 0x8000, scoped, tag = 'output window, operand 0']
    %10 = vsyncpa [#allocation4], 0
    %s11 = scalar_lea.sflag [#allocation4], 1
    %12 = vsyncpa %s11, 0
    %13 = vsyncpa [#allocation7], 0
    %s14 = scalar_lea.sflag [#allocation7], 1
    %15 = vsyncpa %s14, 0
    %16 = vsyncpa [#allocation5], 0
    %s17 = scalar_lea.sflag [#allocation5], 1
    %18 = vsyncpa %s17, 0
    loop: start=0, step=1, limit=8
    $region2: #{tpu_custom_call.1} parent=1 // loop_pre_header
      _
    $region3: #{tpu_custom_call.1} parent=1 // loop_header
      %s20 = sphi 0, %s24
      %p21 = scmp.ge.s32.totalorder %s20, 8
      %s27 = sphi 0, %s39
      %s28 = sphi 0, %s35
      %s29 = sphi 0, %s27
      %s30 = sphi 0, %s28
      %s31 = sphi 0, %s29
      %s32 = sphi 0, %s30
      %s42 = sphi 0, %s44
      %s45 = sphi 0, %s42
      %s46 = sphi 0, %s45
      %s62 = sphi 0, %s46
      %s68 = sphi 0, %s70
      %s71 = sphi 0, %s68
      %s72 = sphi 0, %s71
      %s88 = sphi 0, %s72
      %s94 = sphi 0, %s96
      %s97 = sphi 0, %s94
      %s98 = sphi 0, %s97
      %s114 = sphi 0, %s98
      %s120 = sphi 0, %s122
      %s123 = sphi 0, %s120
      %s124 = sphi 0, %s123
      %s140 = sphi 0, %s124
      %s146 = sphi 0, %s148
      %s149 = sphi 0, %s146
      %s150 = sphi 0, %s149
      %s166 = sphi 0, %s150
      %s172 = sphi 0, %s174
      %s175 = sphi 0, %s172
      %s176 = sphi 0, %s175
      %s192 = sphi 0, %s176
    $region4: #{tpu_custom_call.1} parent=1 // loop_header_branch
      %23 = sbr.rel (%p21) target = $region8
    $region5: #{tpu_custom_call.1} parent=1 // loop_body
      %s25 = ssub.s32 %s20, 1
      %s26 = ssub.s32 %s20, 2
      %s33 = sadd.s32 1, %s28
      %p34 = scmp.ge.s32.totalorder %s33, 3
      %s35 = scalar_select %p34, 0, %s33
      %s36 = sadd.s32 1, %s27
      %s37 = scalar_select %p34, %s36, %s27
      %p38 = scmp.ge.s32.totalorder %s37, 2
      %s39 = scalar_select %p38, 0, %s37
      %s40 = ssub.s32 %s27, %s39
      %p41 = scmp.eq.s32.totalorder %s40, 0
      %s43 = sadd.s32 %s42, 1
      %s44 = scalar_select %p41, %s42, %s43
      %p47 = pneg %p41
      %p48 = scmp.eq.s32.totalorder %s20, 5
      %p49 = por %p47, %p48
      %p50 = scmp.ne.s32.totalorder %s42, %s45
      %p51 = scmp.eq.s32.totalorder %s20, 0
      %p52 = por %p50, %p51
      %p53 = scmp.ne.s32.totalorder %s42, %s45
      %p54 = scmp.eq.s32.totalorder %s25, 5
      %p55 = por %p53, %p54
      %p56 = scmp.ne.s32.totalorder %s45, %s46
      %p57 = scmp.eq.s32.totalorder %s25, 0
      %p58 = por %p56, %p57
      %p59 = scmp.ne.s32.totalorder %s45, %s46
      %p60 = scmp.eq.s32.totalorder %s26, 5
      %p61 = por %p59, %p60
      %p63 = scmp.ne.s32.totalorder %s46, %s62
      %p64 = scmp.eq.s32.totalorder %s26, 0
      %p65 = por %p63, %p64
      %s66 = ssub.s32 %s28, %s35
      %p67 = scmp.eq.s32.totalorder %s66, 0
      %s69 = sadd.s32 %s68, 1
      %s70 = scalar_select %p67, %s68, %s69
      %p73 = pneg %p67
      %p74 = scmp.eq.s32.totalorder %s20, 5
      %p75 = por %p73, %p74
      %p76 = scmp.ne.s32.totalorder %s68, %s71
      %p77 = scmp.eq.s32.totalorder %s20, 0
      %p78 = por %p76, %p77
      %p79 = scmp.ne.s32.totalorder %s68, %s71
      %p80 = scmp.eq.s32.totalorder %s25, 5
      %p81 = por %p79, %p80
      %p82 = scmp.ne.s32.totalorder %s71, %s72
      %p83 = scmp.eq.s32.totalorder %s25, 0
      %p84 = por %p82, %p83
      %p85 = scmp.ne.s32.totalorder %s71, %s72
      %p86 = scmp.eq.s32.totalorder %s26, 5
      %p87 = por %p85, %p86
      %p89 = scmp.ne.s32.totalorder %s72, %s88
      %p90 = scmp.eq.s32.totalorder %s26, 0
      %p91 = por %p89, %p90
      %s92 = ssub.s32 %s28, %s35
      %p93 = scmp.eq.s32.totalorder %s92, 0
      %s95 = sadd.s32 %s94, 1
      %s96 = scalar_select %p93, %s94, %s95
      %p99 = pneg %p93
      %p100 = scmp.eq.s32.totalorder %s20, 5
      %p101 = por %p99, %p100
      %p102 = scmp.ne.s32.totalorder %s94, %s97
      %p103 = scmp.eq.s32.totalorder %s20, 0
      %p104 = por %p102, %p103
      %p105 = scmp.ne.s32.totalorder %s94, %s97
      %p106 = scmp.eq.s32.totalorder %s25, 5
      %p107 = por %p105, %p106
      %p108 = scmp.ne.s32.totalorder %s97, %s98
      %p109 = scmp.eq.s32.totalorder %s25, 0
      %p110 = por %p108, %p109
      %p111 = scmp.ne.s32.totalorder %s97, %s98
      %p112 = scmp.eq.s32.totalorder %s26, 5
      %p113 = por %p111, %p112
      %p115 = scmp.ne.s32.totalorder %s98, %s114
      %p116 = scmp.eq.s32.totalorder %s26, 0
      %p117 = por %p115, %p116
      %s118 = ssub.s32 %s28, %s35
      %p119 = scmp.eq.s32.totalorder %s118, 0
      %s121 = sadd.s32 %s120, 1
      %s122 = scalar_select %p119, %s120, %s121
      %p125 = pneg %p119
      %p126 = scmp.eq.s32.totalorder %s20, 5
      %p127 = por %p125, %p126
      %p128 = scmp.ne.s32.totalorder %s120, %s123
      %p129 = scmp.eq.s32.totalorder %s20, 0
      %p130 = por %p128, %p129
      %p131 = scmp.ne.s32.totalorder %s120, %s123
      %p132 = scmp.eq.s32.totalorder %s25, 5
      %p133 = por %p131, %p132
      %p134 = scmp.ne.s32.totalorder %s123, %s124
      %p135 = scmp.eq.s32.totalorder %s25, 0
      %p136 = por %p134, %p135
      %p137 = scmp.ne.s32.totalorder %s123, %s124
      %p138 = scmp.eq.s32.totalorder %s26, 5
      %p139 = por %p137, %p138
      %p141 = scmp.ne.s32.totalorder %s124, %s140
      %p142 = scmp.eq.s32.totalorder %s26, 0
      %p143 = por %p141, %p142
      %s144 = ssub.s32 %s28, %s35
      %p145 = scmp.eq.s32.totalorder %s144, 0
      %s147 = sadd.s32 %s146, 1
      %s148 = scalar_select %p145, %s146, %s147
      %p151 = pneg %p145
      %p152 = scmp.eq.s32.totalorder %s20, 5
      %p153 = por %p151, %p152
      %p154 = scmp.ne.s32.totalorder %s146, %s149
      %p155 = scmp.eq.s32.totalorder %s20, 0
      %p156 = por %p154, %p155
      %p157 = scmp.ne.s32.totalorder %s146, %s149
      %p158 = scmp.eq.s32.totalorder %s25, 5
      %p159 = por %p157, %p158
      %p160 = scmp.ne.s32.totalorder %s149, %s150
      %p161 = scmp.eq.s32.totalorder %s25, 0
      %p162 = por %p160, %p161
      %p163 = scmp.ne.s32.totalorder %s149, %s150
      %p164 = scmp.eq.s32.totalorder %s26, 5
      %p165 = por %p163, %p164
      %p167 = scmp.ne.s32.totalorder %s150, %s166
      %p168 = scmp.eq.s32.totalorder %s26, 0
      %p169 = por %p167, %p168
      %s170 = ssub.s32 %s27, %s39
      %p171 = scmp.eq.s32.totalorder %s170, 0
      %s173 = sadd.s32 %s172, 1
      %s174 = scalar_select %p171, %s172, %s173
      %p177 = pneg %p171
      %p178 = scmp.eq.s32.totalorder %s20, 5
      %p179 = por %p177, %p178
      %p180 = scmp.ne.s32.totalorder %s172, %s175
      %p181 = scmp.eq.s32.totalorder %s20, 0
      %p182 = por %p180, %p181
      %p183 = scmp.ne.s32.totalorder %s172, %s175
      %p184 = scmp.eq.s32.totalorder %s25, 5
      %p185 = por %p183, %p184
      %p186 = scmp.ne.s32.totalorder %s175, %s176
      %p187 = scmp.eq.s32.totalorder %s25, 0
      %p188 = por %p186, %p187
      %p189 = scmp.ne.s32.totalorder %s175, %s176
      %p190 = scmp.eq.s32.totalorder %s26, 5
      %p191 = por %p189, %p190
      %p193 = scmp.ne.s32.totalorder %s176, %s192
      %p194 = scmp.eq.s32.totalorder %s26, 0
      %p195 = por %p193, %p194
      %p196 = scmp.le.s32.totalorder 1, %s20
      %p197 = scmp.lt.s32.totalorder %s20, 7
      %p198 = pnand %p196, %p197
      %p199 = pneg %p198
      // Predicated region
      $region9: #{tpu_custom_call.1} parent=5 // pred_check
        _
      $region10: #{tpu_custom_call.1} parent=5 // pred_check_branch
        %201 = sbr.rel (%p198) target = $region12
      $region11: #{tpu_custom_call.1} parent=5 // pred_region
        %s202 = ssub.s32 %s20, 1
      $region12: #{tpu_custom_call.1} parent=5 // pred_fallthru
        _
      %p203 = scmp.lt.s32.totalorder %s20, 6
      // Predicated region
      $region13: #{tpu_custom_call.1} parent=5 // pred_check
        %p204 = pneg %p203
      $region14: #{tpu_custom_call.1} parent=5 // pred_check_branch
        %206 = sbr.rel (%p204) target = $region16
      $region15: #{tpu_custom_call.1} parent=5 // pred_region
        // Predicated region
        $region17: #{tpu_custom_call.1} parent=15 // pred_check
          %p207 = pneg %p52
        $region18: #{tpu_custom_call.1} parent=15 // pred_check_branch
          %209 = sbr.rel (%p207) target = $region20
        $region19: #{tpu_custom_call.1} parent=15 // pred_region
          %s210 = sand.u32 %s42, 1
          %s211 = scalar_lea.sflag [#allocation4], %s210
          %s212 = sand.u32 %s42, 1
          %s213 = smul.addr %s212, 32
          %s214 = scalar_lea.vmem [#allocation3], %s213
          %216 = vsyncadd %s211, 0
          %s217 = smul.addr %s27, 4
          %s218 = smul.addr %s217, 8
          %s219 = scalar_lea.hbm %s0, %s218
          %s220 = sshll.u32 %s219, 4
          %s221 = int_to_ptr.hbm [resolvable:$true] %s220
          %s222 = sshll.u32 %s214, 4
          %s223 = int_to_ptr.vmem [resolvable:$true] %s222
          %228 = dma.hbm_to_vmem [thread:$0]  %s221, 512, %s223, %s211, 128, 128, 8
        $region20: #{tpu_custom_call.1} parent=15 // pred_fallthru
          _
        // Predicated region
        $region21: #{tpu_custom_call.1} parent=15 // pred_check
          %p229 = pneg %p78
        $region22: #{tpu_custom_call.1} parent=15 // pred_check_branch
          %231 = sbr.rel (%p229) target = $region24
        $region23: #{tpu_custom_call.1} parent=15 // pred_region
          %s232 = sand.u32 %s68, 1
          %s233 = scalar_lea.sflag [#allocation7], %s232
          %s234 = sand.u32 %s68, 1
          %s235 = smul.addr %s234, 128
          %s236 = scalar_lea.vmem [#allocation6], %s235
          %238 = vsyncadd %s233, 0
          %s239 = smul.addr %s28, 16
          %s240 = smul.addr %s239, 8
          %s241 = scalar_lea.hbm %s1, %s240
          %s242 = sshll.u32 %s241, 4
          %s243 = int_to_ptr.hbm [resolvable:$true] %s242
          %s244 = sshll.u32 %s236, 4
          %s245 = int_to_ptr.vmem [resolvable:$true] %s244
          %250 = dma.hbm_to_vmem [thread:$0]  %s243, 2048, %s245, %s233, 128, 128, 8
        $region24: #{tpu_custom_call.1} parent=15 // pred_fallthru
          _
        // Predicated region
        $region25: #{tpu_custom_call.1} parent=15 // pred_check
          %p251 = pneg %p104
        $region26: #{tpu_custom_call.1} parent=15 // pred_check_branch
          %253 = sbr.rel (%p251) target = $region28
        $region27: #{tpu_custom_call.1} parent=15 // pred_region
          %p254 = scmp.lt.s32.totalorder %s28, 2
          %s255 = scalar_select %p254, %s28, 2
          %s256 = scalar_lea.vmem %s2, %s255
        $region28: #{tpu_custom_call.1} parent=15 // pred_fallthru
          _
        // Predicated region
        $region29: #{tpu_custom_call.1} parent=15 // pred_check
          %p257 = pneg %p130
        $region30: #{tpu_custom_call.1} parent=15 // pred_check_branch
          %259 = sbr.rel (%p257) target = $region32
        $region31: #{tpu_custom_call.1} parent=15 // pred_region
          %p260 = scmp.lt.s32.totalorder %s28, 2
          %s261 = scalar_select %p260, %s28, 2
          %s262 = smul.addr %s261, 4
          %s263 = smul.addr %s262, 8
          %s264 = scalar_lea.vmem %s3, %s263
        $region32: #{tpu_custom_call.1} parent=15 // pred_fallthru
          _
        // Predicated region
        $region33: #{tpu_custom_call.1} parent=15 // pred_check
          %p265 = pneg %p156
        $region34: #{tpu_custom_call.1} parent=15 // pred_check_branch
          %267 = sbr.rel (%p265) target = $region36
        $region35: #{tpu_custom_call.1} parent=15 // pred_region
          %p268 = scmp.lt.s32.totalorder %s28, 2
          %s269 = scalar_select %p268, %s28, 2
          %s270 = smul.addr %s269, 4
          %s271 = smul.addr %s270, 8
          %s272 = scalar_lea.vmem %s4, %s271
        $region36: #{tpu_custom_call.1} parent=15 // pred_fallthru
          _
      $region16: #{tpu_custom_call.1} parent=5 // pred_fallthru
        _
      %p273 = scmp.le.s32.totalorder 1, %s20
      %p274 = scmp.lt.s32.totalorder %s20, 7
      %p275 = pnand %p273, %p274
      %p276 = pneg %p275
      // Predicated region
      $region37: #{tpu_custom_call.1} parent=5 // pred_check
        _
      $region38: #{tpu_custom_call.1} parent=5 // pred_check_branch
        %278 = sbr.rel (%p275) target = $region40
      $region39: #{tpu_custom_call.1} parent=5 // pred_region
        %s279 = ssub.s32 %s20, 1
        %s280 = sand.u32 %s45, 1
        %s281 = scalar_lea.sflag [#allocation4], %s280
        %s282 = sand.u32 %s45, 1
        %s283 = smul.addr %s282, 32
        %s284 = scalar_lea.vmem [#allocation3], %s283
        // Predicated region
        $region41: #{tpu_custom_call.1} parent=39 // pred_check
          %p285 = pneg %p58
        $region42: #{tpu_custom_call.1} parent=39 // pred_check_branch
          %287 = sbr.rel (%p285) target = $region44
        $region43: #{tpu_custom_call.1} parent=39 // pred_region
          %289 = dma.done %s281, 512
        $region44: #{tpu_custom_call.1} parent=39 // pred_fallthru
          _
        %s290 = sand.u32 %s71, 1
        %s291 = scalar_lea.sflag [#allocation7], %s290
        %s292 = sand.u32 %s71, 1
        %s293 = smul.addr %s292, 128
        %s294 = scalar_lea.vmem [#allocation6], %s293
        // Predicated region
        $region45: #{tpu_custom_call.1} parent=39 // pred_check
          %p295 = pneg %p84
        $region46: #{tpu_custom_call.1} parent=39 // pred_check_branch
          %297 = sbr.rel (%p295) target = $region48
        $region47: #{tpu_custom_call.1} parent=39 // pred_region
          %299 = dma.done %s291, 2048
        $region48: #{tpu_custom_call.1} parent=39 // pred_fallthru
          _
        %s300 = sand.u32 %s45, 1
        %s301 = scalar_lea.sflag [#allocation4], %s300
        %s302 = sand.u32 %s45, 1
        %s303 = smul.addr %s302, 32
        %s304 = scalar_lea.vmem [#allocation3], %s303
        %p305 = pneg %p58
        %p306 = pneg %p55
        %s307 = sand.u32 %s71, 1
        %s308 = scalar_lea.sflag [#allocation7], %s307
        %s309 = sand.u32 %s71, 1
        %s310 = smul.addr %s309, 128
        %s311 = scalar_lea.vmem [#allocation6], %s310
        %p312 = pneg %p84
        %p313 = pneg %p81
        %p314 = scmp.lt.s32.totalorder %s30, 2
        %s315 = scalar_select %p314, %s30, 2
        %s316 = scalar_lea.vmem %s2, %s315
        %p317 = pneg %p110
        %p318 = pneg %p107
        %p319 = scmp.lt.s32.totalorder %s30, 2
        %s320 = scalar_select %p319, %s30, 2
        %s321 = smul.addr %s320, 4
        %s322 = smul.addr %s321, 8
        %s323 = scalar_lea.vmem %s3, %s322
        %p324 = pneg %p136
        %p325 = pneg %p133
        %p326 = scmp.lt.s32.totalorder %s30, 2
        %s327 = scalar_select %p326, %s30, 2
        %s328 = smul.addr %s327, 4
        %s329 = smul.addr %s328, 8
        %s330 = scalar_lea.vmem %s4, %s329
        %p331 = pneg %p162
        %p332 = pneg %p159
        %p333 = pneg %p188
        %p334 = pneg %p185
        %s335 = sand.u32 %s175, 1
        %s336 = scalar_lea.sflag [#allocation5], %s335
        %s337 = sand.u32 %s175, 1
        %s338 = smul.addr %s337, 32
        %s339 = scalar_lea.vmem [#allocation8], %s338
        %p340 = scmp.lt.s32.totalorder %s30, 2
        %s341 = scalar_select %p340, %s30, 2
        %s342 = scalar_lea.vmem %s2, %s341
        %p343 = scmp.lt.s32.totalorder %s30, 2
        %s344 = scalar_select %p343, %s30, 2
        %s345 = smul.addr %s344, 4
        %s346 = smul.addr %s345, 8
        %s347 = scalar_lea.vmem %s3, %s346
        %p348 = scmp.lt.s32.totalorder %s30, 2
        %s349 = scalar_select %p348, %s30, 2
        %s350 = smul.addr %s349, 4
        %s351 = smul.addr %s350, 8
        %s352 = scalar_lea.vmem %s4, %s351
        %p353 = scmp.eq.s32.totalorder %s30, 0
        // Predicated region
        $region49: #{tpu_custom_call.1} parent=39 // pred_check
          %p354 = pneg %p353
        $region50: #{tpu_custom_call.1} parent=39 // pred_check_branch
          %356 = sbr.rel (%p354) target = $region52
        $region51: #{tpu_custom_call.1} parent=39 // pred_region
          %v357 = vld [vmem:[%s284] sm:$0xff]
          %v358 = vld [vmem:[%s284 + $0x8] sm:$0xff]
          %v359 = vld [vmem:[%s284 + $0x10] sm:$0xff]
          %v360 = vld [vmem:[%s284 + $0x18] sm:$0xff]
          %361 = vst [vmem:[#allocation2] sm:$0xff] %v357
          %362 = vst [vmem:[#allocation2 + $0x8] sm:$0xff] %v358
          %363 = vst [vmem:[#allocation2 + $0x10] sm:$0xff] %v359
          %364 = vst [vmem:[#allocation2 + $0x18] sm:$0xff] %v360
        $region52: #{tpu_custom_call.1} parent=39 // pred_fallthru
          _
        %v365 = vld [vmem:[#allocation2] sm:$0xff]
        %v366 = vld [vmem:[#allocation2 + $0x8] sm:$0xff]
        %v367 = vld [vmem:[#allocation2 + $0x10] sm:$0xff]
        %v368 = vld [vmem:[#allocation2 + $0x18] sm:$0xff]
        %v369 = vld [vmem:[%s294] sm:$0xff]
        %v370 = vld [vmem:[%s294 + $0x8] sm:$0xff]
        %v371 = vld [vmem:[%s294 + $0x10] sm:$0xff]
        %v372 = vld [vmem:[%s294 + $0x18] sm:$0xff]
        %v373 = vld [vmem:[%s294 + $0x20] sm:$0xff]
        %v374 = vld [vmem:[%s294 + $0x28] sm:$0xff]
        %v375 = vld [vmem:[%s294 + $0x30] sm:$0xff]
        %v376 = vld [vmem:[%s294 + $0x38] sm:$0xff]
        %v377 = vld [vmem:[%s294 + $0x40] sm:$0xff]
        %v378 = vld [vmem:[%s294 + $0x48] sm:$0xff]
        %v379 = vld [vmem:[%s294 + $0x50] sm:$0xff]
        %v380 = vld [vmem:[%s294 + $0x58] sm:$0xff]
        %v381 = vld [vmem:[%s294 + $0x60] sm:$0xff]
        %v382 = vld [vmem:[%s294 + $0x68] sm:$0xff]
        %v383 = vld [vmem:[%s294 + $0x70] sm:$0xff]
        %v384 = vld [vmem:[%s294 + $0x78] sm:$0xff]
        %v385 = vld [vmem:[%s342] sm:$0x1]
        %v387 = vperm.slane %v385, 0
        %389 = vmatpush.msra.mxu0 %v384
        %390 = vmatpush.msra.mxu0 %v383
        %391 = vmatpush.msra.mxu0 %v382
        %392 = vmatpush.msra.mxu0 %v381
        %393 = vmatpush.msra.mxu0 %v380
        %394 = vmatpush.msra.mxu0 %v379
        %395 = vmatpush.msra.mxu0 %v378
        %396 = vmatpush.msra.mxu0 %v377
        %397 = vmatpush.msra.mxu0 %v376
        %398 = vmatpush.msra.mxu0 %v375
        %399 = vmatpush.msra.mxu0 %v374
        %400 = vmatpush.msra.mxu0 %v373
        %401 = vmatpush.msra.mxu0 %v372
        %402 = vmatpush.msra.mxu0 %v371
        %403 = vmatpush.msra.mxu0 %v370
        %404 = vmatpush.msra.mxu0 %v369
        %405 = vmatmul.f32.gmra.mxu0 %v365
        %v406 = vpop.f32.mrf.mxu0
        %v407 = vadd.f32 %v387, %v406
        %408 = vmatmul.f32.gmra.mxu0 %v366
        %v409 = vpop.f32.mrf.mxu0
        %v410 = vadd.f32 %v387, %v409
        %411 = vmatmul.f32.gmra.mxu0 %v367
        %v412 = vpop.f32.mrf.mxu0
        %v413 = vadd.f32 %v387, %v412
        %414 = vmatmul.f32.gmra.mxu0 %v368
        %v415 = vpop.f32.mrf.mxu0
        %v416 = vadd.f32 %v387, %v415
        %417 = vdwg.mxu0
        %v418 = vadd.f32 %v407, %v410
        %v419 = vadd.f32 %v418, %v413
        %v420 = vadd.f32 %v419, %v416
        %v421 = vrot.slane %v420, 4
        %v422 = vadd.f32 %v420, %v421
        %v423 = vrot.slane %v422, 2
        %v424 = vadd.f32 %v422, %v423
        %v425 = vrot.slane %v424, 1
        %v426 = vadd.f32 %v424, %v425
        %v427 = vrcp.pop 32.0
        %v428 = vmul.f32 32.0, %v427
        %v429 = vsub.f32 1.0, %v428
        %v430 = vmul.f32 %v427, %v429
        %v431 = vadd.f32 %v427, %v430
        %vm432 = vweird.f32 %v427
        %v433 = vsel %vm432, %v427, %v431
        %v434 = vmul.f32 %v426, %v433
        %v435 = vsub.f32 %v407, %v434
        %v436 = vsub.f32 %v410, %v434
        %v437 = vsub.f32 %v413, %v434
        %v438 = vsub.f32 %v416, %v434
        %v439 = vmul.f32 %v435, %v435
        %v440 = vmul.f32 %v436, %v436
        %v441 = vmul.f32 %v437, %v437
        %v442 = vmul.f32 %v438, %v438
        %v443 = vadd.f32 %v439, %v440
        %v444 = vadd.f32 %v443, %v441
        %v445 = vadd.f32 %v444, %v442
        %v446 = vrot.slane %v445, 4
        %v447 = vadd.f32 %v445, %v446
        %v448 = vrot.slane %v447, 2
        %v449 = vadd.f32 %v447, %v448
        %v450 = vrot.slane %v449, 1
        %v451 = vadd.f32 %v449, %v450
        %v452 = vmul.f32 %v451, %v433
        %v453 = vadd.f32 %v452, 1e-05
        %v454 = vrsqrt.pop %v453
        %v455 = vmul.f32 %v454, %v453
        %v456 = vmul.f32 %v455, %v454
        %v457 = vmul.f32 0.5, %v456
        %v458 = vsub.f32 1.5, %v457
        %v459 = vmul.f32 %v454, %v458
        %vm460 = vweird.f32 %v453
        %vm461 = vweird.f32 %v454
        %vm462 = vmor %vm460, %vm461
        %v463 = vsel %vm462, %v454, %v459
        %v464 = vmul.f32 %v435, %v463
        %v465 = vmul.f32 %v436, %v463
        %v466 = vmul.f32 %v437, %v463
        %v467 = vmul.f32 %v438, %v463
        %v468 = vld [vmem:[%s347] sm:$0xff]
        %v469 = vld [vmem:[%s347 + $0x8] sm:$0xff]
        %v470 = vld [vmem:[%s347 + $0x10] sm:$0xff]
        %v471 = vld [vmem:[%s347 + $0x18] sm:$0xff]
        %473 = vset.pattern.permute.xlu0 0
        %474 = vperm.xlu0 %473, %v468
        %v475 = vpop.permute.xlu0 %474
        %478 = vset.pattern.permute.xlu0 0
        %479 = vperm.xlu0 %478, %v469
        %v480 = vpop.permute.xlu0 %479
        %483 = vset.pattern.permute.xlu0 0
        %484 = vperm.xlu0 %483, %v470
        %v485 = vpop.permute.xlu0 %484
        %488 = vset.pattern.permute.xlu0 0
        %489 = vperm.xlu0 %488, %v471
        %v490 = vpop.permute.xlu0 %489
        %v492 = vmul.f32 %v464, %v475
        %v493 = vmul.f32 %v465, %v480
        %v494 = vmul.f32 %v466, %v485
        %v495 = vmul.f32 %v467, %v490
        %v496 = vld [vmem:[%s352] sm:$0xff]
        %v497 = vld [vmem:[%s352 + $0x8] sm:$0xff]
        %v498 = vld [vmem:[%s352 + $0x10] sm:$0xff]
        %v499 = vld [vmem:[%s352 + $0x18] sm:$0xff]
        %501 = vset.pattern.permute.xlu0 0
        %502 = vperm.xlu0 %501, %v496
        %v503 = vpop.permute.xlu0 %502
        %506 = vset.pattern.permute.xlu0 0
        %507 = vperm.xlu0 %506, %v497
        %v508 = vpop.permute.xlu0 %507
        %511 = vset.pattern.permute.xlu0 0
        %512 = vperm.xlu0 %511, %v498
        %v513 = vpop.permute.xlu0 %512
        %516 = vset.pattern.permute.xlu0 0
        %517 = vperm.xlu0 %516, %v499
        %v518 = vpop.permute.xlu0 %517
        %v520 = vadd.f32 %v492, %v503
        %v521 = vadd.f32 %v493, %v508
        %v522 = vadd.f32 %v494, %v513
        %v523 = vadd.f32 %v495, %v518
        %v524 = vadd.f32 %v365, %v520
        %v525 = vadd.f32 %v366, %v521
        %v526 = vadd.f32 %v367, %v522
        %v527 = vadd.f32 %v368, %v523
        %528 = vst [vmem:[#allocation2] sm:$0xff] %v524
        %529 = vst [vmem:[#allocation2 + $0x8] sm:$0xff] %v525
        %530 = vst [vmem:[#allocation2 + $0x10] sm:$0xff] %v526
        %531 = vst [vmem:[#allocation2 + $0x18] sm:$0xff] %v527
        %p532 = scmp.eq.s32.totalorder %s30, 2
        // Predicated region
        $region53: #{tpu_custom_call.1} parent=39 // pred_check
          %p533 = pneg %p532
        $region54: #{tpu_custom_call.1} parent=39 // pred_check_branch
          %535 = sbr.rel (%p533) target = $region56
        $region55: #{tpu_custom_call.1} parent=39 // pred_region
          %536 = vst [vmem:[%s339] sm:$0xff] %v524
          %537 = vst [vmem:[%s339 + $0x8] sm:$0xff] %v525
          %538 = vst [vmem:[%s339 + $0x10] sm:$0xff] %v526
          %539 = vst [vmem:[%s339 + $0x18] sm:$0xff] %v527
        $region56: #{tpu_custom_call.1} parent=39 // pred_fallthru
          _
        %s540 = sand.u32 %s175, 1
        %s541 = scalar_lea.sflag [#allocation5], %s540
        %s542 = sand.u32 %s175, 1
        %s543 = smul.addr %s542, 32
        %s544 = scalar_lea.vmem [#allocation8], %s543
        // Predicated region
        $region57: #{tpu_custom_call.1} parent=39 // pred_check
          %p545 = pneg %p185
        $region58: #{tpu_custom_call.1} parent=39 // pred_check_branch
          %547 = sbr.rel (%p545) target = $region60
        $region59: #{tpu_custom_call.1} parent=39 // pred_region
          %549 = vsyncadd %s541, 0
          %s550 = smul.addr %s29, 4
          %s551 = smul.addr %s550, 8
          %s552 = scalar_lea.hbm %s5, %s551
          %s553 = sshll.u32 %s544, 4
          %s554 = int_to_ptr.vmem [resolvable:$true] %s553
          %s555 = sshll.u32 %s552, 4
          %s556 = int_to_ptr.hbm [resolvable:$true] %s555
          %561 = dma.vmem_to_hbm [thread:$0]  %s554, 512, %s556, %s541, 128, 128, 8
        $region60: #{tpu_custom_call.1} parent=39 // pred_fallthru
          _
      $region40: #{tpu_custom_call.1} parent=5 // pred_fallthru
        _
      %p562 = scmp.le.s32.totalorder 2, %s20
      // Predicated region
      $region61: #{tpu_custom_call.1} parent=5 // pred_check
        %p563 = pneg %p562
      $region62: #{tpu_custom_call.1} parent=5 // pred_check_branch
        %565 = sbr.rel (%p563) target = $region64
      $region63: #{tpu_custom_call.1} parent=5 // pred_region
        %s566 = ssub.s32 %s20, 2
        // Predicated region
        $region65: #{tpu_custom_call.1} parent=63 // pred_check
          %p567 = pneg %p191
        $region66: #{tpu_custom_call.1} parent=63 // pred_check_branch
          %569 = sbr.rel (%p567) target = $region68
        $region67: #{tpu_custom_call.1} parent=63 // pred_region
          %s570 = sand.u32 %s176, 1
          %s571 = scalar_lea.sflag [#allocation5], %s570
          %s572 = sand.u32 %s176, 1
          %s573 = smul.addr %s572, 32
          %s574 = scalar_lea.vmem [#allocation8], %s573
          %576 = dma.done %s571, 512
        $region68: #{tpu_custom_call.1} parent=63 // pred_fallthru
          _
      $region64: #{tpu_custom_call.1} parent=5 // pred_fallthru
        _
    $region6: #{tpu_custom_call.1} parent=1 // loop_footer
      %s24 = sadd.s32 1, %s20
    $region7: #{tpu_custom_call.1} parent=1 // loop_footer_branch
      %19 = sbr.rel target = $region3
    $region8: #{tpu_custom_call.1} parent=1 // loop_exit
      _
    %577 = vsyncpa [#allocation4], 1
    %s578 = scalar_lea.sflag [#allocation4], 1
    %579 = vsyncpa %s578, 1
    %580 = vsyncpa [#allocation7], 1
    %s581 = scalar_lea.sflag [#allocation7], 1
    %582 = vsyncpa %s581, 1
    %583 = vsyncpa [#allocation5], 1
    %s584 = scalar_lea.sflag [#allocation5], 1
    %585 = vsyncpa %s584, 1

</llo_original>
